<compile_context>
chip_gen: v6e
topology: v6e:2x2x1
jax: 0.10.0
libtpu: 0.0.40
codegen_flags: <defaults>
</compile_context>

<pallas_src>
import functools

import jax
import jax.numpy as jnp
from jax.experimental import pallas as pl
from jax.experimental.pallas import tpu as pltpu


def _round_up(x: int, m: int) -> int:
    return (x + m - 1) // m * m


def _policy_mlp_kernel(x_ref, p_ref, out_ref, *, feat):
    """Fused padded 4-layer MLP: Linear->ReLU x3 -> Linear.

    p_ref packs the parameters as:
      rows [i*feat, (i+1)*feat) : weight_i, zero-padded to (feat, feat), (in, out) layout
      row   4*feat + i          : bias_i,  zero-padded to feat lanes
    All slices below are static -> no runtime indexing cost.
    """
    h = x_ref[...]
    for i in range(4):
        w = p_ref[pl.ds(i * feat, feat), :]           # (feat, feat)
        b = p_ref[pl.ds(4 * feat + i, 1), :]          # (1, feat) -> sublane broadcast
        h = jnp.dot(h, w, preferred_element_type=jnp.float32) + b
        if i < 3:
            h = jnp.maximum(h, 0.0)
    out_ref[...] = h.astype(out_ref.dtype)


@functools.partial(jax.jit, static_argnames=("feat", "action_dim"))
def _policy_forward_padded(x, packed, *, feat, action_dim):
    """x: (batch, obs_dim) f32.  packed: (4*feat + 8, feat) f32 parameter slab."""
    batch, obs_dim = x.shape

    # Batch tiling: single block for small batches, 256-row tiles (gridded,
    # "parallel" -> both v7x TCs) for large ones.  Weights stay VMEM-resident.
    b_tile_max = 256
    if batch <= b_tile_max:
        b_pad = max(8, _round_up(batch, 8))
        b_tile = b_pad
    else:
        b_pad = _round_up(batch, b_tile_max)
        b_tile = b_tile_max
    grid = (b_pad // b_tile,)

    # Lane/sublane-pad the input to a full (8k, 128m) slab (layout plumbing,
    # done by XLA outside the kernel).
    x_p = jnp.zeros((b_pad, feat), jnp.float32).at[:batch, :obs_dim].set(x)

    out = pl.pallas_call(
        functools.partial(_policy_mlp_kernel, feat=feat),
        out_shape=jax.ShapeDtypeStruct((b_pad, feat), jnp.float32),
        grid=grid,
        in_specs=[
            pl.BlockSpec((b_tile, feat), lambda i: (i, 0)),       # x tile per grid step
            pl.BlockSpec(packed.shape, lambda i: (0, 0)),         # params resident
        ],
        out_specs=pl.BlockSpec((b_tile, feat), lambda i: (i, 0)), # lane-dense output
        compiler_params=pltpu.CompilerParams(
            dimension_semantics=("parallel",)),
    )(x_p, packed)

    return out[:batch, :action_dim]


def policy_network_forward(x, packed, feat, action_dim):
    return _policy_forward_padded(x, packed, feat=feat, action_dim=action_dim)


def init_params(key, obs_dim, hidden_size, action_dim):
    """Deterministic init mimicking nn.Linear default (uniform +/- 1/sqrt(fan_in)).

    Weights stored as (in, out) == PyTorch W.T ; biases as (1, out).
    """
    dims = [(obs_dim, hidden_size),
            (hidden_size, hidden_size * 2),
            (hidden_size * 2, hidden_size),
            (hidden_size, action_dim)]
    params = {}
    for i, (fan_in, fan_out) in enumerate(dims, start=1):
        key, kw, kb = jax.random.split(key, 3)
        bound = 1.0 / (fan_in ** 0.5)
        params[f"w{i}"] = jax.random.uniform(
            kw, (fan_in, fan_out), jnp.float32, minval=-bound, maxval=bound)
        params[f"b{i}"] = jax.random.uniform(
            kb, (1, fan_out), jnp.float32, minval=-bound, maxval=bound)
    return params


def pack_params(params, feat):
    """Pack 4 (in,out) weights + 4 biases into one zero-padded (4*feat+8, feat) slab."""
    rows = 4 * feat + 8  # +8 keeps the row count a sublane multiple
    buf = jnp.zeros((rows, feat), jnp.float32)
    for i in range(4):
        w = params[f"w{i + 1}"]
        b = params[f"b{i + 1}"].reshape(-1)
        buf = buf.at[i * feat:i * feat + w.shape[0], :w.shape[1]].set(w)
        buf = buf.at[4 * feat + i, :b.shape[0]].set(b)
    return buf


def reference_forward(x, params):
    h = jnp.maximum(x @ params["w1"] + params["b1"], 0.0)
    h = jnp.maximum(h @ params["w2"] + params["b2"], 0.0)
    h = jnp.maximum(h @ params["w3"] + params["b3"], 0.0)
    return h @ params["w4"] + params["b4"]


if __name__ == "__main__":
    key = jax.random.PRNGKey(0)
    k_params, k_x = jax.random.split(key)

    batch = 8          # number of observations
    obs_dim = 4        # observation_space.shape[0]
    hidden_size = 32   # hidden_size
    action_dim = 2     # action_space.n

    params = init_params(k_params, obs_dim, hidden_size, action_dim)
    x = jax.random.normal(k_x, (batch, obs_dim), jnp.float32)

    # One-time packing / padding of parameters (done outside the hot path).
    feat = _round_up(max(obs_dim, hidden_size, hidden_size * 2, action_dim), 128)
    packed = pack_params(params, feat)

    logits = policy_network_forward(x, packed, feat, action_dim)
    jax.block_until_ready(logits)

    ref = reference_forward(x, params)
    assert logits.shape == (batch, action_dim)
    assert jnp.allclose(logits, ref, atol=1e-5, rtol=1e-5)

    print("KERNEL_OK")
</pallas_src>

<mosaic_0001>
module attributes {stable_mosaic.version = 11 : i64} {
  func.func @_policy_mlp_kernel(%arg0: i32, %arg1: memref<8x128xf32, #tpu.memory_space<vmem>>, %arg2: memref<520x128xf32, #tpu.memory_space<vmem>>, %arg3: memref<8x128xf32, #tpu.memory_space<vmem>>) attributes {dimension_semantics = [#tpu.dimension_semantics<parallel>], iteration_bounds = array<i64: 1>, scalar_prefetch = 0 : i64, scratch_operands = 0 : i64, tpu.core_type = #tpu.core_type<tc>, window_params = [{transform_indices = @transform_0, window_bounds = array<i64: 8, 128>}, {pipeline_mode = #tpu.pipeline_mode<synchronous>, transform_indices = @transform_1, window_bounds = array<i64: 520, 128>}, {transform_indices = @transform_2, window_bounds = array<i64: 8, 128>}]} {
    %c0 = arith.constant 0 : index
    %c0_0 = arith.constant 0 : index
    %0 = vector.load %arg1[%c0, %c0_0] : memref<8x128xf32, #tpu.memory_space<vmem>>, vector<8x128xf32>
    %c0_1 = arith.constant 0 : index
    %c0_2 = arith.constant 0 : index
    %1 = vector.load %arg2[%c0_1, %c0_2] : memref<520x128xf32, #tpu.memory_space<vmem>>, vector<128x128xf32>
    %c512 = arith.constant 512 : index
    %c0_3 = arith.constant 0 : index
    %2 = vector.load %arg2[%c512, %c0_3] : memref<520x128xf32, #tpu.memory_space<vmem>>, vector<1x128xf32>
    %cst = arith.constant dense<0.000000e+00> : vector<8x128xf32>
    %3 = tpu.matmul %0, %1, %cst {dimension_numbers = #tpu.dot_dimension_numbers<[1], [0], [0], [1], [0, 0, 1, 1], [], []>} : vector<8x128xf32>, vector<128x128xf32>, vector<8x128xf32> -> vector<8x128xf32>
    %4 = vector.broadcast %2 : vector<1x128xf32> to vector<8x128xf32>
    %5 = arith.addf %3, %4 : vector<8x128xf32>
    %cst_4 = arith.constant 0.000000e+00 : f32
    %6 = vector.broadcast %cst_4 : f32 to vector<8x128xf32>
    %7 = arith.maximumf %5, %6 : vector<8x128xf32>
    %c128 = arith.constant 128 : index
    %c0_5 = arith.constant 0 : index
    %8 = vector.load %arg2[%c128, %c0_5] : memref<520x128xf32, #tpu.memory_space<vmem>>, vector<128x128xf32>
    %c513 = arith.constant 513 : index
    %c0_6 = arith.constant 0 : index
    %9 = vector.load %arg2[%c513, %c0_6] : memref<520x128xf32, #tpu.memory_space<vmem>>, vector<1x128xf32>
    %cst_7 = arith.constant dense<0.000000e+00> : vector<8x128xf32>
    %10 = tpu.matmul %7, %8, %cst_7 {dimension_numbers = #tpu.dot_dimension_numbers<[1], [0], [0], [1], [0, 0, 1, 1], [], []>} : vector<8x128xf32>, vector<128x128xf32>, vector<8x128xf32> -> vector<8x128xf32>
    %11 = vector.broadcast %9 : vector<1x128xf32> to vector<8x128xf32>
    %12 = arith.addf %10, %11 : vector<8x128xf32>
    %cst_8 = arith.constant 0.000000e+00 : f32
    %13 = vector.broadcast %cst_8 : f32 to vector<8x128xf32>
    %14 = arith.maximumf %12, %13 : vector<8x128xf32>
    %c256 = arith.constant 256 : index
    %c0_9 = arith.constant 0 : index
    %15 = vector.load %arg2[%c256, %c0_9] : memref<520x128xf32, #tpu.memory_space<vmem>>, vector<128x128xf32>
    %c514 = arith.constant 514 : index
    %c0_10 = arith.constant 0 : index
    %16 = vector.load %arg2[%c514, %c0_10] : memref<520x128xf32, #tpu.memory_space<vmem>>, vector<1x128xf32>
    %cst_11 = arith.constant dense<0.000000e+00> : vector<8x128xf32>
    %17 = tpu.matmul %14, %15, %cst_11 {dimension_numbers = #tpu.dot_dimension_numbers<[1], [0], [0], [1], [0, 0, 1, 1], [], []>} : vector<8x128xf32>, vector<128x128xf32>, vector<8x128xf32> -> vector<8x128xf32>
    %18 = vector.broadcast %16 : vector<1x128xf32> to vector<8x128xf32>
    %19 = arith.addf %17, %18 : vector<8x128xf32>
    %cst_12 = arith.constant 0.000000e+00 : f32
    %20 = vector.broadcast %cst_12 : f32 to vector<8x128xf32>
    %21 = arith.maximumf %19, %20 : vector<8x128xf32>
    %c384 = arith.constant 384 : index
    %c0_13 = arith.constant 0 : index
    %22 = vector.load %arg2[%c384, %c0_13] : memref<520x128xf32, #tpu.memory_space<vmem>>, vector<128x128xf32>
    %c515 = arith.constant 515 : index
    %c0_14 = arith.constant 0 : index
    %23 = vector.load %arg2[%c515, %c0_14] : memref<520x128xf32, #tpu.memory_space<vmem>>, vector<1x128xf32>
    %cst_15 = arith.constant dense<0.000000e+00> : vector<8x128xf32>
    %24 = tpu.matmul %21, %22, %cst_15 {dimension_numbers = #tpu.dot_dimension_numbers<[1], [0], [0], [1], [0, 0, 1, 1], [], []>} : vector<8x128xf32>, vector<128x128xf32>, vector<8x128xf32> -> vector<8x128xf32>
    %25 = vector.broadcast %23 : vector<1x128xf32> to vector<8x128xf32>
    %26 = arith.addf %24, %25 : vector<8x128xf32>
    %c0_16 = arith.constant 0 : index
    %c0_17 = arith.constant 0 : index
    %27 = vector.load %arg3[%c0_16, %c0_17] : memref<8x128xf32, #tpu.memory_space<vmem>>, vector<8x128xf32>
    tpu.vector_store %arg3[%c0_16, %c0_17], %26 {strides = array<i32>} : memref<8x128xf32, #tpu.memory_space<vmem>>, vector<8x128xf32>,
    return
  }
  func.func @transform_0(%arg0: i32) -> (i32, i32) {
    %c0_i32 = arith.constant 0 : i32
    %c0_i32_0 = arith.constant 0 : i32
    return %arg0, %c0_i32 : i32, i32
  }
  func.func @transform_1(%arg0: i32) -> (i32, i32) {
    %c0_i32 = arith.constant 0 : i32
    %c0_i32_0 = arith.constant 0 : i32
    %c0_i32_1 = arith.constant 0 : i32
    return %c0_i32, %c0_i32_0 : i32, i32
  }
  func.func @transform_2(%arg0: i32) -> (i32, i32) {
    %c0_i32 = arith.constant 0 : i32
    %c0_i32_0 = arith.constant 0 : i32
    return %arg0, %c0_i32 : i32, i32
  }
}

</mosaic_0001>

<llo_original>
// kernel: _policy_forward_padded.1
$region0: #{_policy_forward_padded.1}
  #allocation0 [shape = 'u32[]', space=smem, size = 0x4, offset = 0x4, fixed_abs, tag = 'smem constant byte address 0x4 - core index']
  #allocation1 [shape = 'u32[144,128]{1,0:T(1,128)}', space=vmem, size = 0x12000, scoped, tag = 'internal scratch']
  %s0 = inlined_call_operand.vmem [shape: f32[8,128], index: 0, kind: input, shape index: {}]
  %s1 = inlined_call_operand.hbm [shape: f32[520,128], index: 1, kind: input, shape index: {}]
  %s2 = inlined_call_operand.vmem [shape: f32[8,128], index: 2, kind: output, shape index: {}]
  %s3 = sld [smem:[#allocation0]]
  $region22: #{_policy_forward_padded.1} parent=0
    _
  %s5 = ssub.s32 1, %s3
  %s6 = scalar_select 0, %s5, %s3
  $region1: #{_policy_forward_padded.1} parent=0
    #allocation2 [shape = 'u8[266240]{0}', space=vmem, size = 0x41000, scoped, tag = 'input window, operand 1, single buffered']
    #allocation3 [shape = 's32[1]{0}', space=sflag, size = 0x4, scoped, tag = 'scoped memory for _policy_forward_padded.1']
    %7 = vsyncpa [#allocation3], 0
    // Predicated region
    $region2: #{_policy_forward_padded.1} parent=1 // pred_check
      _
    $region3: #{_policy_forward_padded.1} parent=1 // pred_check_branch
      %9 = sbr.rel (0) target = $region5
    $region4: #{_policy_forward_padded.1} parent=1 // pred_region
      _
    $region5: #{_policy_forward_padded.1} parent=1 // pred_fallthru
      _
    // Predicated region
    $region6: #{_policy_forward_padded.1} parent=1 // pred_check
      _
    $region7: #{_policy_forward_padded.1} parent=1 // pred_check_branch
      %11 = sbr.rel (0) target = $region9
    $region8: #{_policy_forward_padded.1} parent=1 // pred_region
      %s13 = ssub.s32 8320, 8320
      %14 = vsyncadd [#allocation3], %s13
      %s15 = sshll.u32 [#allocation2], 4
      %s16 = int_to_ptr.vmem [resolvable:$true] %s15
      %21 = dma.hbm_to_vmem [thread:$0]  %s1, 8320, %s16, [#allocation3], 128, 128, 8
    $region9: #{_policy_forward_padded.1} parent=1 // pred_fallthru
      _
    // Predicated region
    $region10: #{_policy_forward_padded.1} parent=1 // pred_check
      _
    $region11: #{_policy_forward_padded.1} parent=1 // pred_check_branch
      %23 = sbr.rel (0) target = $region13
    $region12: #{_policy_forward_padded.1} parent=1 // pred_region
      %24 = dma.done [#allocation3], 8320
    $region13: #{_policy_forward_padded.1} parent=1 // pred_fallthru
      _
    %v25 = vld [vmem:[%s0] sm:$0xff]
    %v26 = vld [vmem:[#allocation2] sm:$0xff]
    %v27 = vld [vmem:[#allocation2 + $0x8] sm:$0xff]
    %v28 = vld [vmem:[#allocation2 + $0x10] sm:$0xff]
    %v29 = vld [vmem:[#allocation2 + $0x18] sm:$0xff]
    %v30 = vld [vmem:[#allocation2 + $0x20] sm:$0xff]
    %v31 = vld [vmem:[#allocation2 + $0x28] sm:$0xff]
    %v32 = vld [vmem:[#allocation2 + $0x30] sm:$0xff]
    %v33 = vld [vmem:[#allocation2 + $0x38] sm:$0xff]
    %v34 = vld [vmem:[#allocation2 + $0x40] sm:$0xff]
    %v35 = vld [vmem:[#allocation2 + $0x48] sm:$0xff]
    %v36 = vld [vmem:[#allocation2 + $0x50] sm:$0xff]
    %v37 = vld [vmem:[#allocation2 + $0x58] sm:$0xff]
    %v38 = vld [vmem:[#allocation2 + $0x60] sm:$0xff]
    %v39 = vld [vmem:[#allocation2 + $0x68] sm:$0xff]
    %v40 = vld [vmem:[#allocation2 + $0x70] sm:$0xff]
    %v41 = vld [vmem:[#allocation2 + $0x78] sm:$0xff]
    %v42 = vld [vmem:[#allocation2 + $0x200] sm:$0x1]
    %v43 = vlaneseq
    %v44 = vshrl.u32 %v43, 7
    %v45 = vsub.s32 0, %v44
    %v46 = vrot.slane %v42, %v45
    %47 = vmatprep.subr.mxu0 0.0
    %48 = vmatpush1.msra.mxu0 %v41
    %49 = vmatprep.subr.mxu0 0.0
    %50 = vmatpush1.msra.mxu0 %v40
    %51 = vmatprep.subr.mxu0 0.0
    %52 = vmatpush1.msra.mxu0 %v39
    %53 = vmatprep.subr.mxu0 0.0
    %54 = vmatpush1.msra.mxu0 %v38
    %55 = vmatprep.subr.mxu0 0.0
    %56 = vmatpush1.msra.mxu0 %v37
    %57 = vmatprep.subr.mxu0 0.0
    %58 = vmatpush1.msra.mxu0 %v36
    %59 = vmatprep.subr.mxu0 0.0
    %60 = vmatpush1.msra.mxu0 %v35
    %61 = vmatprep.subr.mxu0 0.0
    %62 = vmatpush1.msra.mxu0 %v34
    %63 = vmatprep.subr.mxu0 0.0
    %64 = vmatpush1.msra.mxu0 %v33
    %65 = vmatprep.subr.mxu0 0.0
    %66 = vmatpush1.msra.mxu0 %v32
    %67 = vmatprep.subr.mxu0 0.0
    %68 = vmatpush1.msra.mxu0 %v31
    %69 = vmatprep.subr.mxu0 0.0
    %70 = vmatpush1.msra.mxu0 %v30
    %71 = vmatprep.subr.mxu0 0.0
    %72 = vmatpush1.msra.mxu0 %v29
    %73 = vmatprep.subr.mxu0 0.0
    %74 = vmatpush1.msra.mxu0 %v28
    %75 = vmatprep.subr.mxu0 0.0
    %76 = vmatpush1.msra.mxu0 %v27
    %77 = vmatprep.subr.mxu0 0.0
    %78 = vmatpush1.msra.mxu0 %v26
    %79 = vmatprep.subr.mxu0 0.0
    %80 = vmatpush2.msra.mxu0 0.0
    %81 = vmatprep.subr.mxu0 0.0
    %82 = vmatpush2.msra.mxu0 0.0
    %83 = vmatprep.subr.mxu0 0.0
    %84 = vmatpush2.msra.mxu0 0.0
    %85 = vmatprep.subr.mxu0 0.0
    %86 = vmatpush2.msra.mxu0 0.0
    %87 = vmatprep.subr.mxu0 0.0
    %88 = vmatpush2.msra.mxu0 0.0
    %89 = vmatprep.subr.mxu0 0.0
    %90 = vmatpush2.msra.mxu0 0.0
    %91 = vmatprep.subr.mxu0 0.0
    %92 = vmatpush2.msra.mxu0 0.0
    %93 = vmatprep.subr.mxu0 0.0
    %94 = vmatpush2.msra.mxu0 0.0
    %95 = vmatprep.subr.mxu0 0.0
    %96 = vmatpush2.msra.mxu0 0.0
    %97 = vmatprep.subr.mxu0 0.0
    %98 = vmatpush2.msra.mxu0 0.0
    %99 = vmatprep.subr.mxu0 0.0
    %100 = vmatpush2.msra.mxu0 0.0
    %101 = vmatprep.subr.mxu0 0.0
    %102 = vmatpush2.msra.mxu0 0.0
    %103 = vmatprep.subr.mxu0 0.0
    %104 = vmatpush2.msra.mxu0 0.0
    %105 = vmatprep.subr.mxu0 0.0
    %106 = vmatpush2.msra.mxu0 0.0
    %107 = vmatprep.subr.mxu0 0.0
    %108 = vmatpush2.msra.mxu0 0.0
    %109 = vmatprep.subr.mxu0 0.0
    %110 = vmatpush2.msra.mxu0 0.0
    %111 = vmatprep.mubr.f32.mxu0 0.0
    %112 = vmatmul.mubr.f32.gmra.mxu0 %v25
    %v113 = vpop.f32.mrf.mxu0
    %v114 = vadd.f32 %v46, %v113
    %v115 = vpop.f32.mrf.mxu0
    %116 = vdwg.mxu0
    %v117 = vmax.f32 %v114, 0.0
    %v118 = vld [vmem:[#allocation2 + $0x80] sm:$0xff]
    %v119 = vld [vmem:[#allocation2 + $0x88] sm:$0xff]
    %v120 = vld [vmem:[#allocation2 + $0x90] sm:$0xff]
    %v121 = vld [vmem:[#allocation2 + $0x98] sm:$0xff]
    %v122 = vld [vmem:[#allocation2 + $0xa0] sm:$0xff]
    %v123 = vld [vmem:[#allocation2 + $0xa8] sm:$0xff]
    %v124 = vld [vmem:[#allocation2 + $0xb0] sm:$0xff]
    %v125 = vld [vmem:[#allocation2 + $0xb8] sm:$0xff]
    %v126 = vld [vmem:[#allocation2 + $0xc0] sm:$0xff]
    %v127 = vld [vmem:[#allocation2 + $0xc8] sm:$0xff]
    %v128 = vld [vmem:[#allocation2 + $0xd0] sm:$0xff]
    %v129 = vld [vmem:[#allocation2 + $0xd8] sm:$0xff]
    %v130 = vld [vmem:[#allocation2 + $0xe0] sm:$0xff]
    %v131 = vld [vmem:[#allocation2 + $0xe8] sm:$0xff]
    %v132 = vld [vmem:[#allocation2 + $0xf0] sm:$0xff]
    %v133 = vld [vmem:[#allocation2 + $0xf8] sm:$0xff]
    %v134 = vld [vmem:[#allocation2 + $0x201] sm:$0x1]
    %v135 = vlaneseq
    %v136 = vshrl.u32 %v135, 7
    %v137 = vsub.s32 0, %v136
    %v138 = vrot.slane %v134, %v137
    %139 = vmatprep.subr.mxu0 0.0
    %140 = vmatpush1.msra.mxu0 %v133
    %141 = vmatprep.subr.mxu0 0.0
    %142 = vmatpush1.msra.mxu0 %v132
    %143 = vmatprep.subr.mxu0 0.0
    %144 = vmatpush1.msra.mxu0 %v131
    %145 = vmatprep.subr.mxu0 0.0
    %146 = vmatpush1.msra.mxu0 %v130
    %147 = vmatprep.subr.mxu0 0.0
    %148 = vmatpush1.msra.mxu0 %v129
    %149 = vmatprep.subr.mxu0 0.0
    %150 = vmatpush1.msra.mxu0 %v128
    %151 = vmatprep.subr.mxu0 0.0
    %152 = vmatpush1.msra.mxu0 %v127
    %153 = vmatprep.subr.mxu0 0.0
    %154 = vmatpush1.msra.mxu0 %v126
    %155 = vmatprep.subr.mxu0 0.0
    %156 = vmatpush1.msra.mxu0 %v125
    %157 = vmatprep.subr.mxu0 0.0
    %158 = vmatpush1.msra.mxu0 %v124
    %159 = vmatprep.subr.mxu0 0.0
    %160 = vmatpush1.msra.mxu0 %v123
    %161 = vmatprep.subr.mxu0 0.0
    %162 = vmatpush1.msra.mxu0 %v122
    %163 = vmatprep.subr.mxu0 0.0
    %164 = vmatpush1.msra.mxu0 %v121
    %165 = vmatprep.subr.mxu0 0.0
    %166 = vmatpush1.msra.mxu0 %v120
    %167 = vmatprep.subr.mxu0 0.0
    %168 = vmatpush1.msra.mxu0 %v119
    %169 = vmatprep.subr.mxu0 0.0
    %170 = vmatpush1.msra.mxu0 %v118
    %171 = vmatprep.subr.mxu0 0.0
    %172 = vmatpush2.msra.mxu0 0.0
    %173 = vmatprep.subr.mxu0 0.0
    %174 = vmatpush2.msra.mxu0 0.0
    %175 = vmatprep.subr.mxu0 0.0
    %176 = vmatpush2.msra.mxu0 0.0
    %177 = vmatprep.subr.mxu0 0.0
    %178 = vmatpush2.msra.mxu0 0.0
    %179 = vmatprep.subr.mxu0 0.0
    %180 = vmatpush2.msra.mxu0 0.0
    %181 = vmatprep.subr.mxu0 0.0
    %182 = vmatpush2.msra.mxu0 0.0
    %183 = vmatprep.subr.mxu0 0.0
    %184 = vmatpush2.msra.mxu0 0.0
    %185 = vmatprep.subr.mxu0 0.0
    %186 = vmatpush2.msra.mxu0 0.0
    %187 = vmatprep.subr.mxu0 0.0
    %188 = vmatpush2.msra.mxu0 0.0
    %189 = vmatprep.subr.mxu0 0.0
    %190 = vmatpush2.msra.mxu0 0.0
    %191 = vmatprep.subr.mxu0 0.0
    %192 = vmatpush2.msra.mxu0 0.0
    %193 = vmatprep.subr.mxu0 0.0
    %194 = vmatpush2.msra.mxu0 0.0
    %195 = vmatprep.subr.mxu0 0.0
    %196 = vmatpush2.msra.mxu0 0.0
    %197 = vmatprep.subr.mxu0 0.0
    %198 = vmatpush2.msra.mxu0 0.0
    %199 = vmatprep.subr.mxu0 0.0
    %200 = vmatpush2.msra.mxu0 0.0
    %201 = vmatprep.subr.mxu0 0.0
    %202 = vmatpush2.msra.mxu0 0.0
    %203 = vmatprep.mubr.f32.mxu0 0.0
    %204 = vmatmul.mubr.f32.gmra.mxu0 %v117
    %v205 = vpop.f32.mrf.mxu0
    %v206 = vadd.f32 %v138, %v205
    %v207 = vpop.f32.mrf.mxu0
    %208 = vdwg.mxu0
    %v209 = vmax.f32 %v206, 0.0
    %v210 = vld [vmem:[#allocation2 + $0x100] sm:$0xff]
    %v211 = vld [vmem:[#allocation2 + $0x108] sm:$0xff]
    %v212 = vld [vmem:[#allocation2 + $0x110] sm:$0xff]
    %v213 = vld [vmem:[#allocation2 + $0x118] sm:$0xff]
    %v214 = vld [vmem:[#allocation2 + $0x120] sm:$0xff]
    %v215 = vld [vmem:[#allocation2 + $0x128] sm:$0xff]
    %v216 = vld [vmem:[#allocation2 + $0x130] sm:$0xff]
    %v217 = vld [vmem:[#allocation2 + $0x138] sm:$0xff]
    %v218 = vld [vmem:[#allocation2 + $0x140] sm:$0xff]
    %v219 = vld [vmem:[#allocation2 + $0x148] sm:$0xff]
    %v220 = vld [vmem:[#allocation2 + $0x150] sm:$0xff]
    %v221 = vld [vmem:[#allocation2 + $0x158] sm:$0xff]
    %v222 = vld [vmem:[#allocation2 + $0x160] sm:$0xff]
    %v223 = vld [vmem:[#allocation2 + $0x168] sm:$0xff]
    %v224 = vld [vmem:[#allocation2 + $0x170] sm:$0xff]
    %v225 = vld [vmem:[#allocation2 + $0x178] sm:$0xff]
    %v226 = vld [vmem:[#allocation2 + $0x202] sm:$0x1]
    %v227 = vlaneseq
    %v228 = vshrl.u32 %v227, 7
    %v229 = vsub.s32 0, %v228
    %v230 = vrot.slane %v226, %v229
    %231 = vmatprep.subr.mxu0 0.0
    %232 = vmatpush1.msra.mxu0 %v225
    %233 = vmatprep.subr.mxu0 0.0
    %234 = vmatpush1.msra.mxu0 %v224
    %235 = vmatprep.subr.mxu0 0.0
    %236 = vmatpush1.msra.mxu0 %v223
    %237 = vmatprep.subr.mxu0 0.0
    %238 = vmatpush1.msra.mxu0 %v222
    %239 = vmatprep.subr.mxu0 0.0
    %240 = vmatpush1.msra.mxu0 %v221
    %241 = vmatprep.subr.mxu0 0.0
    %242 = vmatpush1.msra.mxu0 %v220
    %243 = vmatprep.subr.mxu0 0.0
    %244 = vmatpush1.msra.mxu0 %v219
    %245 = vmatprep.subr.mxu0 0.0
    %246 = vmatpush1.msra.mxu0 %v218
    %247 = vmatprep.subr.mxu0 0.0
    %248 = vmatpush1.msra.mxu0 %v217
    %249 = vmatprep.subr.mxu0 0.0
    %250 = vmatpush1.msra.mxu0 %v216
    %251 = vmatprep.subr.mxu0 0.0
    %252 = vmatpush1.msra.mxu0 %v215
    %253 = vmatprep.subr.mxu0 0.0
    %254 = vmatpush1.msra.mxu0 %v214
    %255 = vmatprep.subr.mxu0 0.0
    %256 = vmatpush1.msra.mxu0 %v213
    %257 = vmatprep.subr.mxu0 0.0
    %258 = vmatpush1.msra.mxu0 %v212
    %259 = vmatprep.subr.mxu0 0.0
    %260 = vmatpush1.msra.mxu0 %v211
    %261 = vmatprep.subr.mxu0 0.0
    %262 = vmatpush1.msra.mxu0 %v210
    %263 = vmatprep.subr.mxu0 0.0
    %264 = vmatpush2.msra.mxu0 0.0
    %265 = vmatprep.subr.mxu0 0.0
    %266 = vmatpush2.msra.mxu0 0.0
    %267 = vmatprep.subr.mxu0 0.0
    %268 = vmatpush2.msra.mxu0 0.0
    %269 = vmatprep.subr.mxu0 0.0
    %270 = vmatpush2.msra.mxu0 0.0
    %271 = vmatprep.subr.mxu0 0.0
    %272 = vmatpush2.msra.mxu0 0.0
    %273 = vmatprep.subr.mxu0 0.0
    %274 = vmatpush2.msra.mxu0 0.0
    %275 = vmatprep.subr.mxu0 0.0
    %276 = vmatpush2.msra.mxu0 0.0
    %277 = vmatprep.subr.mxu0 0.0
    %278 = vmatpush2.msra.mxu0 0.0
    %279 = vmatprep.subr.mxu0 0.0
    %280 = vmatpush2.msra.mxu0 0.0
    %281 = vmatprep.subr.mxu0 0.0
    %282 = vmatpush2.msra.mxu0 0.0
    %283 = vmatprep.subr.mxu0 0.0
    %284 = vmatpush2.msra.mxu0 0.0
    %285 = vmatprep.subr.mxu0 0.0
    %286 = vmatpush2.msra.mxu0 0.0
    %287 = vmatprep.subr.mxu0 0.0
    %288 = vmatpush2.msra.mxu0 0.0
    %289 = vmatprep.subr.mxu0 0.0
    %290 = vmatpush2.msra.mxu0 0.0
    %291 = vmatprep.subr.mxu0 0.0
    %292 = vmatpush2.msra.mxu0 0.0
    %293 = vmatprep.subr.mxu0 0.0
    %294 = vmatpush2.msra.mxu0 0.0
    %295 = vmatprep.mubr.f32.mxu0 0.0
    %296 = vmatmul.mubr.f32.gmra.mxu0 %v209
    %v297 = vpop.f32.mrf.mxu0
    %v298 = vadd.f32 %v230, %v297
    %v299 = vpop.f32.mrf.mxu0
    %300 = vdwg.mxu0
    %v301 = vmax.f32 %v298, 0.0
    %v302 = vld [vmem:[#allocation2 + $0x180] sm:$0xff]
    %v303 = vld [vmem:[#allocation2 + $0x188] sm:$0xff]
    %v304 = vld [vmem:[#allocation2 + $0x190] sm:$0xff]
    %v305 = vld [vmem:[#allocation2 + $0x198] sm:$0xff]
    %v306 = vld [vmem:[#allocation2 + $0x1a0] sm:$0xff]
    %v307 = vld [vmem:[#allocation2 + $0x1a8] sm:$0xff]
    %v308 = vld [vmem:[#allocation2 + $0x1b0] sm:$0xff]
    %v309 = vld [vmem:[#allocation2 + $0x1b8] sm:$0xff]
    %v310 = vld [vmem:[#allocation2 + $0x1c0] sm:$0xff]
    %v311 = vld [vmem:[#allocation2 + $0x1c8] sm:$0xff]
    %v312 = vld [vmem:[#allocation2 + $0x1d0] sm:$0xff]
    %v313 = vld [vmem:[#allocation2 + $0x1d8] sm:$0xff]
    %v314 = vld [vmem:[#allocation2 + $0x1e0] sm:$0xff]
    %v315 = vld [vmem:[#allocation2 + $0x1e8] sm:$0xff]
    %v316 = vld [vmem:[#allocation2 + $0x1f0] sm:$0xff]
    %v317 = vld [vmem:[#allocation2 + $0x1f8] sm:$0xff]
    %v318 = vld [vmem:[#allocation2 + $0x203] sm:$0x1]
    %v319 = vlaneseq
    %v320 = vshrl.u32 %v319, 7
    %v321 = vsub.s32 0, %v320
    %v322 = vrot.slane %v318, %v321
    %323 = vmatprep.subr.mxu0 0.0
    %324 = vmatpush1.msra.mxu0 %v317
    %325 = vmatprep.subr.mxu0 0.0
    %326 = vmatpush1.msra.mxu0 %v316
    %327 = vmatprep.subr.mxu0 0.0
    %328 = vmatpush1.msra.mxu0 %v315
    %329 = vmatprep.subr.mxu0 0.0
    %330 = vmatpush1.msra.mxu0 %v314
    %331 = vmatprep.subr.mxu0 0.0
    %332 = vmatpush1.msra.mxu0 %v313
    %333 = vmatprep.subr.mxu0 0.0
    %334 = vmatpush1.msra.mxu0 %v312
    %335 = vmatprep.subr.mxu0 0.0
    %336 = vmatpush1.msra.mxu0 %v311
    %337 = vmatprep.subr.mxu0 0.0
    %338 = vmatpush1.msra.mxu0 %v310
    %339 = vmatprep.subr.mxu0 0.0
    %340 = vmatpush1.msra.mxu0 %v309
    %341 = vmatprep.subr.mxu0 0.0
    %342 = vmatpush1.msra.mxu0 %v308
    %343 = vmatprep.subr.mxu0 0.0
    %344 = vmatpush1.msra.mxu0 %v307
    %345 = vmatprep.subr.mxu0 0.0
    %346 = vmatpush1.msra.mxu0 %v306
    %347 = vmatprep.subr.mxu0 0.0
    %348 = vmatpush1.msra.mxu0 %v305
    %349 = vmatprep.subr.mxu0 0.0
    %350 = vmatpush1.msra.mxu0 %v304
    %351 = vmatprep.subr.mxu0 0.0
    %352 = vmatpush1.msra.mxu0 %v303
    %353 = vmatprep.subr.mxu0 0.0
    %354 = vmatpush1.msra.mxu0 %v302
    %355 = vmatprep.subr.mxu0 0.0
    %356 = vmatpush2.msra.mxu0 0.0
    %357 = vmatprep.subr.mxu0 0.0
    %358 = vmatpush2.msra.mxu0 0.0
    %359 = vmatprep.subr.mxu0 0.0
    %360 = vmatpush2.msra.mxu0 0.0
    %361 = vmatprep.subr.mxu0 0.0
    %362 = vmatpush2.msra.mxu0 0.0
    %363 = vmatprep.subr.mxu0 0.0
    %364 = vmatpush2.msra.mxu0 0.0
    %365 = vmatprep.subr.mxu0 0.0
    %366 = vmatpush2.msra.mxu0 0.0
    %367 = vmatprep.subr.mxu0 0.0
    %368 = vmatpush2.msra.mxu0 0.0
    %369 = vmatprep.subr.mxu0 0.0
    %370 = vmatpush2.msra.mxu0 0.0
    %371 = vmatprep.subr.mxu0 0.0
    %372 = vmatpush2.msra.mxu0 0.0
    %373 = vmatprep.subr.mxu0 0.0
    %374 = vmatpush2.msra.mxu0 0.0
    %375 = vmatprep.subr.mxu0 0.0
    %376 = vmatpush2.msra.mxu0 0.0
    %377 = vmatprep.subr.mxu0 0.0
    %378 = vmatpush2.msra.mxu0 0.0
    %379 = vmatprep.subr.mxu0 0.0
    %380 = vmatpush2.msra.mxu0 0.0
    %381 = vmatprep.subr.mxu0 0.0
    %382 = vmatpush2.msra.mxu0 0.0
    %383 = vmatprep.subr.mxu0 0.0
    %384 = vmatpush2.msra.mxu0 0.0
    %385 = vmatprep.subr.mxu0 0.0
    %386 = vmatpush2.msra.mxu0 0.0
    %387 = vmatprep.mubr.f32.mxu0 0.0
    %388 = vmatmul.mubr.f32.gmra.mxu0 %v301
    %v389 = vpop.f32.mrf.mxu0
    %v390 = vadd.f32 %v322, %v389
    %v391 = vpop.f32.mrf.mxu0
    %392 = vdwg.mxu0
    %393 = vst [vmem:[%s2] sm:$0xff] %v390
    // Predicated region
    $region14: #{_policy_forward_padded.1} parent=1 // pred_check
      _
    $region15: #{_policy_forward_padded.1} parent=1 // pred_check_branch
      %395 = sbr.rel (0) target = $region17
    $region16: #{_policy_forward_padded.1} parent=1 // pred_region
      _
    $region17: #{_policy_forward_padded.1} parent=1 // pred_fallthru
      _
    // Predicated region
    $region18: #{_policy_forward_padded.1} parent=1 // pred_check
      _
    $region19: #{_policy_forward_padded.1} parent=1 // pred_check_branch
      %397 = sbr.rel (0) target = $region21
    $region20: #{_policy_forward_padded.1} parent=1 // pred_region
      _
    $region21: #{_policy_forward_padded.1} parent=1 // pred_fallthru
      _
    %398 = vsyncpa [#allocation3], 1

</llo_original>
